<compile_context>
chip_gen: v5e
topology: v5e:2x2
jax: 0.10.0
libtpu: 0.0.40
codegen_flags: <defaults>
</compile_context>

<pallas_src>
import jax
import jax.numpy as jnp
from jax.experimental import pallas as pl
from jax.experimental.pallas import tpu as pltpu


def _round_up(x, m):
    return ((x + m - 1) // m) * m


def latent_kernel(x_ref, w_ref, b_ref, eps_ref, out_ref):
    # Single fused MXU matmul for both projections: [tm, Kp] @ [Kp, 2*Np].
    proj = jnp.dot(x_ref[...], w_ref[...],
                   preferred_element_type=jnp.float32) + b_ref[...]
    n = proj.shape[-1] // 2                     # == Np, a multiple of 128
    mu = proj[:, :n]
    p = proj[:, n:]

    sigma = jax.nn.softplus(p)                  # exp/log1p -> EUP slot
    z = mu + sigma * eps_ref[...]

    # One lane-dense output slab: [ z | mu | p ], all 128-aligned slices.
    out_ref[:, :n] = z.astype(out_ref.dtype)
    out_ref[:, n:2 * n] = mu.astype(out_ref.dtype)
    out_ref[:, 2 * n:] = p.astype(out_ref.dtype)


def latent_layer(x, w_mu, b_mu, w_p, b_p, eps, *, block_m=512):
    """x: [B, in_dim]; w_*: [in_dim, out_dim]; b_*: [out_dim]; eps: [B, out_dim].

    Returns (z, mu, p), each [B, out_dim] float32.
    """
    B, in_dim = x.shape
    out_dim = w_mu.shape[1]

    # TPU-friendly padded sizes: lanes (last dim) to 128, sublanes to 8.
    Kp = _round_up(in_dim, 128)
    Np = _round_up(out_dim, 128)
    Bp = _round_up(B, 8)
    tm = min(block_m, Bp)                 # B tile (multiple of 8)
    Bp = _round_up(Bp, tm)                # make the grid exact

    f32 = jnp.float32
    # Zero-padded, fused operands.
    x_p = jnp.zeros((Bp, Kp), f32).at[:B, :in_dim].set(x.astype(f32))
    w_cat = (jnp.zeros((Kp, 2 * Np), f32)
             .at[:in_dim, :out_dim].set(w_mu.astype(f32))
             .at[:in_dim, Np:Np + out_dim].set(w_p.astype(f32)))
    b_cat = (jnp.zeros((1, 2 * Np), f32)
             .at[0, :out_dim].set(b_mu.astype(f32))
             .at[0, Np:Np + out_dim].set(b_p.astype(f32)))
    eps_p = jnp.zeros((Bp, Np), f32).at[:B, :out_dim].set(eps.astype(f32))

    grid = (Bp // tm,)
    slab = pl.pallas_call(
        latent_kernel,
        out_shape=jax.ShapeDtypeStruct((Bp, 3 * Np), f32),
        grid=grid,
        in_specs=[
            pl.BlockSpec((tm, Kp), lambda i: (i, 0)),        # x tile
            pl.BlockSpec((Kp, 2 * Np), lambda i: (0, 0)),    # fused weights (resident)
            pl.BlockSpec((1, 2 * Np), lambda i: (0, 0)),     # fused bias (resident)
            pl.BlockSpec((tm, Np), lambda i: (i, 0)),        # eps tile
        ],
        out_specs=pl.BlockSpec((tm, 3 * Np), lambda i: (i, 0)),
        compiler_params=pltpu.CompilerParams(
            dimension_semantics=("parallel",)),
    )(x_p, w_cat, b_cat, eps_p)

    # Un-pad and split the lane-dense slab.
    z = slab[:B, 0 * Np:0 * Np + out_dim]
    mu = slab[:B, 1 * Np:1 * Np + out_dim]
    p = slab[:B, 2 * Np:2 * Np + out_dim]
    return z, mu, p


if __name__ == "__main__":
    B, in_dim, out_dim = 8, 32, 16

    key = jax.random.PRNGKey(0)
    kx, kwm, kbm, kwp, kbp, keps = jax.random.split(key, 6)

    # Deterministic synthetic parameters (PyTorch Linear stores W [out,in];
    # here weights are already laid out transposed as [in, out]).
    x = jax.random.normal(kx, (B, in_dim), jnp.float32)
    w_mu = jax.random.normal(kwm, (in_dim, out_dim), jnp.float32) * 0.1
    b_mu = jax.random.normal(kbm, (out_dim,), jnp.float32) * 0.1
    w_p = jax.random.normal(kwp, (in_dim, out_dim), jnp.float32) * 0.1
    b_p = jax.random.normal(kbp, (out_dim,), jnp.float32) * 0.1
    eps = jax.random.normal(keps, (B, out_dim), jnp.float32)

    z, mu, p = latent_layer(x, w_mu, b_mu, w_p, b_p, eps)
    jax.block_until_ready((z, mu, p))

    # Pure-JAX reference check.
    mu_ref = x @ w_mu + b_mu
    p_ref = x @ w_p + b_p
    z_ref = mu_ref + jax.nn.softplus(p_ref) * eps
    assert jnp.allclose(mu, mu_ref, atol=1e-5, rtol=1e-5)
    assert jnp.allclose(p, p_ref, atol=1e-5, rtol=1e-5)
    assert jnp.allclose(z, z_ref, atol=1e-5, rtol=1e-5)

    print("KERNEL_OK")
</pallas_src>

<mosaic_0001>
module attributes {stable_mosaic.version = 11 : i64} {
  func.func @latent_kernel(%arg0: i32, %arg1: memref<8x128xf32, #tpu.memory_space<vmem>>, %arg2: memref<128x256xf32, #tpu.memory_space<vmem>>, %arg3: memref<1x256xf32, #tpu.memory_space<vmem>>, %arg4: memref<8x128xf32, #tpu.memory_space<vmem>>, %arg5: memref<8x384xf32, #tpu.memory_space<vmem>>) attributes {dimension_semantics = [#tpu.dimension_semantics<parallel>], iteration_bounds = array<i64: 1>, scalar_prefetch = 0 : i64, scratch_operands = 0 : i64, tpu.core_type = #tpu.core_type<tc>, window_params = [{transform_indices = @transform_0, window_bounds = array<i64: 8, 128>}, {pipeline_mode = #tpu.pipeline_mode<synchronous>, transform_indices = @transform_1, window_bounds = array<i64: 128, 256>}, {pipeline_mode = #tpu.pipeline_mode<synchronous>, transform_indices = @transform_2, window_bounds = array<i64: 1, 256>}, {transform_indices = @transform_3, window_bounds = array<i64: 8, 128>}, {transform_indices = @transform_4, window_bounds = array<i64: 8, 384>}]} {
    %c0 = arith.constant 0 : index
    %c0_0 = arith.constant 0 : index
    %0 = vector.load %arg1[%c0, %c0_0] : memref<8x128xf32, #tpu.memory_space<vmem>>, vector<8x128xf32>
    %c0_1 = arith.constant 0 : index
    %c0_2 = arith.constant 0 : index
    %1 = vector.load %arg2[%c0_1, %c0_2] : memref<128x256xf32, #tpu.memory_space<vmem>>, vector<128x256xf32>
    %cst = arith.constant dense<0.000000e+00> : vector<8x256xf32>
    %2 = tpu.matmul %0, %1, %cst {dimension_numbers = #tpu.dot_dimension_numbers<[1], [0], [0], [1], [0, 0, 1, 1], [], []>} : vector<8x128xf32>, vector<128x256xf32>, vector<8x256xf32> -> vector<8x256xf32>
    %c0_3 = arith.constant 0 : index
    %c0_4 = arith.constant 0 : index
    %3 = vector.load %arg3[%c0_3, %c0_4] : memref<1x256xf32, #tpu.memory_space<vmem>>, vector<1x256xf32>
    %4 = vector.broadcast %3 : vector<1x256xf32> to vector<8x256xf32>
    %5 = arith.addf %2, %4 : vector<8x256xf32>
    %6 = vector.extract_strided_slice %5 {offsets = [0, 0], sizes = [8, 128], strides = [1, 1]} : vector<8x256xf32> to vector<8x128xf32>
    %7 = vector.extract_strided_slice %5 {offsets = [0, 128], sizes = [8, 128], strides = [1, 1]} : vector<8x256xf32> to vector<8x128xf32>
    %cst_5 = arith.constant 0.000000e+00 : f32
    %8 = vector.broadcast %cst_5 : f32 to vector<8x128xf32>
    %9 = arith.maximumf %7, %8 : vector<8x128xf32>
    %10 = vector.broadcast %cst_5 : f32 to vector<8x128xf32>
    %11 = arith.subf %7, %10 : vector<8x128xf32>
    %12 = arith.cmpf one, %11, %11 : vector<8x128xf32>
    %13 = vector.broadcast %cst_5 : f32 to vector<8x128xf32>
    %14 = arith.addf %7, %13 : vector<8x128xf32>
    %15 = math.absf %11 : vector<8x128xf32>
    %cst_6 = arith.constant 0.000000e+00 : f32
    %16 = vector.broadcast %cst_6 : f32 to vector<8x128xf32>
    %17 = arith.subf %16, %15 : vector<8x128xf32>
    %18 = math.exp %17 : vector<8x128xf32>
    %19 = math.log1p %18 : vector<8x128xf32>
    %20 = arith.addf %9, %19 : vector<8x128xf32>
    %21 = arith.select %12, %14, %20 : vector<8x128xi1>, vector<8x128xf32>
    %c0_7 = arith.constant 0 : index
    %c0_8 = arith.constant 0 : index
    %22 = vector.load %arg4[%c0_7, %c0_8] : memref<8x128xf32, #tpu.memory_space<vmem>>, vector<8x128xf32>
    %23 = arith.mulf %21, %22 : vector<8x128xf32>
    %24 = arith.addf %6, %23 : vector<8x128xf32>
    %c0_9 = arith.constant 0 : index
    %c0_10 = arith.constant 0 : index
    %25 = vector.load %arg5[%c0_9, %c0_10] : memref<8x384xf32, #tpu.memory_space<vmem>>, vector<8x128xf32>
    tpu.vector_store %arg5[%c0_9, %c0_10], %24 {strides = array<i32>} : memref<8x384xf32, #tpu.memory_space<vmem>>, vector<8x128xf32>,
    %c0_11 = arith.constant 0 : index
    %c128 = arith.constant 128 : index
    %26 = vector.load %arg5[%c0_11, %c128] : memref<8x384xf32, #tpu.memory_space<vmem>>, vector<8x128xf32>
    tpu.vector_store %arg5[%c0_11, %c128], %6 {strides = array<i32>} : memref<8x384xf32, #tpu.memory_space<vmem>>, vector<8x128xf32>,
    %c0_12 = arith.constant 0 : index
    %c256 = arith.constant 256 : index
    %27 = vector.load %arg5[%c0_12, %c256] : memref<8x384xf32, #tpu.memory_space<vmem>>, vector<8x128xf32>
    tpu.vector_store %arg5[%c0_12, %c256], %7 {strides = array<i32>} : memref<8x384xf32, #tpu.memory_space<vmem>>, vector<8x128xf32>,
    return
  }
  func.func @transform_0(%arg0: i32) -> (i32, i32) {
    %c0_i32 = arith.constant 0 : i32
    %c0_i32_0 = arith.constant 0 : i32
    return %arg0, %c0_i32 : i32, i32
  }
  func.func @transform_1(%arg0: i32) -> (i32, i32) {
    %c0_i32 = arith.constant 0 : i32
    %c0_i32_0 = arith.constant 0 : i32
    %c0_i32_1 = arith.constant 0 : i32
    return %c0_i32, %c0_i32_0 : i32, i32
  }
  func.func @transform_2(%arg0: i32) -> (i32, i32) {
    %c0_i32 = arith.constant 0 : i32
    %c0_i32_0 = arith.constant 0 : i32
    %c0_i32_1 = arith.constant 0 : i32
    return %c0_i32, %c0_i32_0 : i32, i32
  }
  func.func @transform_3(%arg0: i32) -> (i32, i32) {
    %c0_i32 = arith.constant 0 : i32
    %c0_i32_0 = arith.constant 0 : i32
    return %arg0, %c0_i32 : i32, i32
  }
  func.func @transform_4(%arg0: i32) -> (i32, i32) {
    %c0_i32 = arith.constant 0 : i32
    %c0_i32_0 = arith.constant 0 : i32
    return %arg0, %c0_i32 : i32, i32
  }
}

</mosaic_0001>

<llo_original>
// kernel: tpu_custom_call.1
$region0: #{tpu_custom_call.1}
  #allocation0 [shape = 'u32[]', space=smem, size = 0x4, offset = 0x4, fixed_abs, tag = 'smem constant byte address 0x4 - core index']
  #allocation1 [shape = 'u32[72,128]{1,0:T(1,128)}', space=vmem, size = 0x9000, scoped, tag = 'internal scratch']
  %s0 = inlined_call_operand.hbm [shape: f32[8,128], index: 0, kind: input, shape index: {}]
  %s1 = inlined_call_operand.hbm [shape: f32[128,256], index: 1, kind: input, shape index: {}]
  %s2 = inlined_call_operand.hbm [shape: f32[1,256], index: 2, kind: input, shape index: {}]
  %s3 = inlined_call_operand.hbm [shape: f32[8,128], index: 3, kind: input, shape index: {}]
  %s4 = inlined_call_operand.hbm [shape: f32[8,384], index: 4, kind: output, shape index: {}]
  %s5 = sld [smem:[#allocation0]]
  $region42: #{tpu_custom_call.1} parent=0
    _
  %s7 = ssub.s32 1, %s5
  %s8 = scalar_select 0, %s7, %s5
  $region1: #{tpu_custom_call.1} parent=0
    #allocation2 [shape = 'u8[4096]{0}', space=vmem, size = 0x1000, scoped, tag = 'input window, operand 0, single buffered']
    #allocation3 [shape = 's32[1]{0}', space=sflag, size = 0x4, scoped, tag = 'scoped memory for tpu_custom_call.1']
    #allocation4 [shape = 's32[1]{0}', space=sflag, size = 0x4, scoped, tag = 'scoped memory for tpu_custom_call.1']
    #allocation5 [shape = 'u8[131072]{0}', space=vmem, size = 0x20000, scoped, tag = 'input window, operand 1, single buffered']
    #allocation6 [shape = 's32[1]{0}', space=sflag, size = 0x4, scoped, tag = 'scoped memory for tpu_custom_call.1']
    #allocation7 [shape = 'u8[1024]{0}', space=vmem, size = 0x400, scoped, tag = 'input window, operand 2, single buffered']
    #allocation8 [shape = 'u8[4096]{0}', space=vmem, size = 0x1000, scoped, tag = 'input window, operand 3, single buffered']
    #allocation9 [shape = 's32[1]{0}', space=sflag, size = 0x4, scoped, tag = 'scoped memory for tpu_custom_call.1']
    #allocation10 [shape = 'u8[12288]{0}', space=vmem, size = 0x3000, scoped, tag = 'output window, operand 0, single buffered']
    %9 = vsyncpa [#allocation3], 0
    %10 = vsyncpa [#allocation6], 0
    %11 = vsyncpa [#allocation9], 0
    %12 = vsyncpa [#allocation4], 0
    // Predicated region
    $region2: #{tpu_custom_call.1} parent=1 // pred_check
      _
    $region3: #{tpu_custom_call.1} parent=1 // pred_check_branch
      %14 = sbr.rel (0) target = $region5
    $region4: #{tpu_custom_call.1} parent=1 // pred_region
      %16 = vsyncadd [#allocation3], 0
      %s18 = sshll.u32 %s0, 4
      %s19 = int_to_ptr.hbm [resolvable:$true] %s18
      %s20 = sshll.u32 [#allocation2], 4
      %s21 = int_to_ptr.vmem [resolvable:$true] %s20
      %23 = dma.hbm_to_vmem [thread:$0]  %s19, 128, %s21, [#allocation3]
    $region5: #{tpu_custom_call.1} parent=1 // pred_fallthru
      _
    // Predicated region
    $region6: #{tpu_custom_call.1} parent=1 // pred_check
      _
    $region7: #{tpu_custom_call.1} parent=1 // pred_check_branch
      %25 = sbr.rel (0) target = $region9
    $region8: #{tpu_custom_call.1} parent=1 // pred_region
      %27 = vsyncadd [#allocation6], 0
      %s28 = sshll.u32 %s1, 4
      %s29 = int_to_ptr.hbm [resolvable:$true] %s28
      %s30 = sshll.u32 [#allocation5], 4
      %s31 = int_to_ptr.vmem [resolvable:$true] %s30
      %36 = dma.hbm_to_vmem [thread:$0]  %s29, 4096, %s31, [#allocation6], 256, 256, 16
    $region9: #{tpu_custom_call.1} parent=1 // pred_fallthru
      _
    // Predicated region
    $region10: #{tpu_custom_call.1} parent=1 // pred_check
      _
    $region11: #{tpu_custom_call.1} parent=1 // pred_check_branch
      %38 = sbr.rel (0) target = $region13
    $region12: #{tpu_custom_call.1} parent=1 // pred_region
      %40 = vsyncadd [#allocation6], 0
      %s42 = sshll.u32 %s2, 4
      %s43 = int_to_ptr.hbm [resolvable:$true] %s42
      %s44 = sshll.u32 [#allocation7], 4
      %s45 = int_to_ptr.vmem [resolvable:$true] %s44
      %47 = dma.hbm_to_vmem [thread:$0]  %s43, 32, %s45, [#allocation6]
    $region13: #{tpu_custom_call.1} parent=1 // pred_fallthru
      _
    // Predicated region
    $region14: #{tpu_custom_call.1} parent=1 // pred_check
      _
    $region15: #{tpu_custom_call.1} parent=1 // pred_check_branch
      %49 = sbr.rel (0) target = $region17
    $region16: #{tpu_custom_call.1} parent=1 // pred_region
      %51 = vsyncadd [#allocation9], 0
      %s53 = sshll.u32 %s3, 4
      %s54 = int_to_ptr.hbm [resolvable:$true] %s53
      %s55 = sshll.u32 [#allocation8], 4
      %s56 = int_to_ptr.vmem [resolvable:$true] %s55
      %58 = dma.hbm_to_vmem [thread:$0]  %s54, 128, %s56, [#allocation9]
    $region17: #{tpu_custom_call.1} parent=1 // pred_fallthru
      _
    // Predicated region
    $region18: #{tpu_custom_call.1} parent=1 // pred_check
      _
    $region19: #{tpu_custom_call.1} parent=1 // pred_check_branch
      %60 = sbr.rel (0) target = $region21
    $region20: #{tpu_custom_call.1} parent=1 // pred_region
      %62 = dma.done [#allocation3], 128
    $region21: #{tpu_custom_call.1} parent=1 // pred_fallthru
      _
    // Predicated region
    $region22: #{tpu_custom_call.1} parent=1 // pred_check
      _
    $region23: #{tpu_custom_call.1} parent=1 // pred_check_branch
      %64 = sbr.rel (0) target = $region25
    $region24: #{tpu_custom_call.1} parent=1 // pred_region
      %66 = dma.done [#allocation6], 4096
    $region25: #{tpu_custom_call.1} parent=1 // pred_fallthru
      _
    // Predicated region
    $region26: #{tpu_custom_call.1} parent=1 // pred_check
      _
    $region27: #{tpu_custom_call.1} parent=1 // pred_check_branch
      %68 = sbr.rel (0) target = $region29
    $region28: #{tpu_custom_call.1} parent=1 // pred_region
      %70 = dma.done [#allocation6], 32
    $region29: #{tpu_custom_call.1} parent=1 // pred_fallthru
      _
    // Predicated region
    $region30: #{tpu_custom_call.1} parent=1 // pred_check
      _
    $region31: #{tpu_custom_call.1} parent=1 // pred_check_branch
      %72 = sbr.rel (0) target = $region33
    $region32: #{tpu_custom_call.1} parent=1 // pred_region
      %74 = dma.done [#allocation9], 128
    $region33: #{tpu_custom_call.1} parent=1 // pred_fallthru
      _
    %v75 = vld [vmem:[#allocation2] sm:$0xff]
    %v76 = vld [vmem:[#allocation5] sm:$0xff]
    %v77 = vld [vmem:[#allocation5 + $0x8] sm:$0xff]
    %v78 = vld [vmem:[#allocation5 + $0x10] sm:$0xff]
    %v79 = vld [vmem:[#allocation5 + $0x18] sm:$0xff]
    %v80 = vld [vmem:[#allocation5 + $0x20] sm:$0xff]
    %v81 = vld [vmem:[#allocation5 + $0x28] sm:$0xff]
    %v82 = vld [vmem:[#allocation5 + $0x30] sm:$0xff]
    %v83 = vld [vmem:[#allocation5 + $0x38] sm:$0xff]
    %v84 = vld [vmem:[#allocation5 + $0x40] sm:$0xff]
    %v85 = vld [vmem:[#allocation5 + $0x48] sm:$0xff]
    %v86 = vld [vmem:[#allocation5 + $0x50] sm:$0xff]
    %v87 = vld [vmem:[#allocation5 + $0x58] sm:$0xff]
    %v88 = vld [vmem:[#allocation5 + $0x60] sm:$0xff]
    %v89 = vld [vmem:[#allocation5 + $0x68] sm:$0xff]
    %v90 = vld [vmem:[#allocation5 + $0x70] sm:$0xff]
    %v91 = vld [vmem:[#allocation5 + $0x78] sm:$0xff]
    %v92 = vld [vmem:[#allocation5 + $0x80] sm:$0xff]
    %v93 = vld [vmem:[#allocation5 + $0x88] sm:$0xff]
    %v94 = vld [vmem:[#allocation5 + $0x90] sm:$0xff]
    %v95 = vld [vmem:[#allocation5 + $0x98] sm:$0xff]
    %v96 = vld [vmem:[#allocation5 + $0xa0] sm:$0xff]
    %v97 = vld [vmem:[#allocation5 + $0xa8] sm:$0xff]
    %v98 = vld [vmem:[#allocation5 + $0xb0] sm:$0xff]
    %v99 = vld [vmem:[#allocation5 + $0xb8] sm:$0xff]
    %v100 = vld [vmem:[#allocation5 + $0xc0] sm:$0xff]
    %v101 = vld [vmem:[#allocation5 + $0xc8] sm:$0xff]
    %v102 = vld [vmem:[#allocation5 + $0xd0] sm:$0xff]
    %v103 = vld [vmem:[#allocation5 + $0xd8] sm:$0xff]
    %v104 = vld [vmem:[#allocation5 + $0xe0] sm:$0xff]
    %v105 = vld [vmem:[#allocation5 + $0xe8] sm:$0xff]
    %v106 = vld [vmem:[#allocation5 + $0xf0] sm:$0xff]
    %v107 = vld [vmem:[#allocation5 + $0xf8] sm:$0xff]
    %v108 = vld [vmem:[#allocation7] sm:$0x3]
    %v110 = vperm.slane %v108, 0
    %v111 = vperm.slane %v108, 1
    %114 = vmatpush.msra.mxu0 %v106
    %115 = vmatpush.msra.mxu0 %v104
    %116 = vmatpush.msra.mxu0 %v102
    %117 = vmatpush.msra.mxu0 %v100
    %118 = vmatpush.msra.mxu0 %v98
    %119 = vmatpush.msra.mxu0 %v96
    %120 = vmatpush.msra.mxu0 %v94
    %121 = vmatpush.msra.mxu0 %v92
    %122 = vmatpush.msra.mxu0 %v90
    %123 = vmatpush.msra.mxu0 %v88
    %124 = vmatpush.msra.mxu0 %v86
    %125 = vmatpush.msra.mxu0 %v84
    %126 = vmatpush.msra.mxu0 %v82
    %127 = vmatpush.msra.mxu0 %v80
    %128 = vmatpush.msra.mxu0 %v78
    %129 = vmatpush.msra.mxu0 %v76
    %130 = vmatmul.f32.gmra.mxu0 %v75
    %v131 = vpop.f32.mrf.mxu0
    %v132 = vadd.f32 %v110, %v131
    %133 = vdwg.mxu0
    %134 = vmatpush.msra.mxu0 %v107
    %135 = vmatpush.msra.mxu0 %v105
    %136 = vmatpush.msra.mxu0 %v103
    %137 = vmatpush.msra.mxu0 %v101
    %138 = vmatpush.msra.mxu0 %v99
    %139 = vmatpush.msra.mxu0 %v97
    %140 = vmatpush.msra.mxu0 %v95
    %141 = vmatpush.msra.mxu0 %v93
    %142 = vmatpush.msra.mxu0 %v91
    %143 = vmatpush.msra.mxu0 %v89
    %144 = vmatpush.msra.mxu0 %v87
    %145 = vmatpush.msra.mxu0 %v85
    %146 = vmatpush.msra.mxu0 %v83
    %147 = vmatpush.msra.mxu0 %v81
    %148 = vmatpush.msra.mxu0 %v79
    %149 = vmatpush.msra.mxu0 %v77
    %150 = vmatmul.f32.gmra.mxu0 %v75
    %v151 = vpop.f32.mrf.mxu0
    %v152 = vadd.f32 %v111, %v151
    %153 = vdwg.mxu0
    %v154 = vmax.f32 %v152, 0.0
    %vm155 = vcmp.ne.f32.partialorder %v152, %v152
    %v156 = vadd.f32 %v152, 0.0
    %v157 = vand.u32 2147483647, %v152
    %v158 = vsub.f32 0.0, %v157
    %v159 = vmul.f32 %v158, 1.442695
    %v160 = vpow.pop %v159
    %v161 = vadd.f32 %v160, 1.0
    %v162 = vlog2.pop %v161
    %v163 = vmul.f32 %v162, 0.6931472
    %v164 = vmul.f32 -0.5, %v160
    %v165 = vadd.f32 %v164, 1.0
    %v166 = vmul.f32 %v165, %v160
    %v167 = vand.u32 2147483647, %v160
    %vm168 = vcmp.lt.f32.partialorder %v167, 0.0004427343
    %v169 = vsel %vm168, %v166, %v163
    %v170 = vadd.f32 %v154, %v169
    %v171 = vsel %vm155, %v156, %v170
    %v172 = vld [vmem:[#allocation8] sm:$0xff]
    %v173 = vmul.f32 %v171, %v172
    %v174 = vadd.f32 %v132, %v173
    %175 = vst [vmem:[#allocation10] sm:$0xff] %v174
    %176 = vst [vmem:[#allocation10 + $0x8] sm:$0xff] %v132
    %177 = vst [vmem:[#allocation10 + $0x10] sm:$0xff] %v152
    // Predicated region
    $region34: #{tpu_custom_call.1} parent=1 // pred_check
      _
    $region35: #{tpu_custom_call.1} parent=1 // pred_check_branch
      %179 = sbr.rel (0) target = $region37
    $region36: #{tpu_custom_call.1} parent=1 // pred_region
      %181 = vsyncadd [#allocation4], 0
      %s183 = sshll.u32 [#allocation10], 4
      %s184 = int_to_ptr.vmem [resolvable:$true] %s183
      %s185 = sshll.u32 %s4, 4
      %s186 = int_to_ptr.hbm [resolvable:$true] %s185
      %188 = dma.vmem_to_hbm [thread:$0]  %s184, 384, %s186, [#allocation4]
    $region37: #{tpu_custom_call.1} parent=1 // pred_fallthru
      _
    // Predicated region
    $region38: #{tpu_custom_call.1} parent=1 // pred_check
      _
    $region39: #{tpu_custom_call.1} parent=1 // pred_check_branch
      %190 = sbr.rel (0) target = $region41
    $region40: #{tpu_custom_call.1} parent=1 // pred_region
      %192 = dma.done [#allocation4], 384
    $region41: #{tpu_custom_call.1} parent=1 // pred_fallthru
      _
    %193 = vsyncpa [#allocation3], 1
    %194 = vsyncpa [#allocation6], 1
    %195 = vsyncpa [#allocation9], 1
    %196 = vsyncpa [#allocation4], 1

</llo_original>
